<compile_context>
chip_gen: v7x
topology: tpu7x:2x2x1
jax: 0.10.0
libtpu: 0.0.40
codegen_flags: <defaults>
</compile_context>

<pallas_src>
import functools

import jax
import jax.numpy as jnp
from jax.experimental import pallas as pl
from jax.experimental.pallas import tpu as pltpu


def _round_up(x, m):
    return (x + m - 1) // m * m


def _mlp_kernel(n_fc, tb, batch, x_ref, *refs):
    """refs = (w0, b0, w1, b1, ..., w_logits_T, b_logits, out_ref).

    x_ref : (tb, 2F) user||item embeddings (bf16 or f32).
    All weight/bias refs use constant index_maps -> VMEM-resident.
    """
    out_ref = refs[-1]
    params = refs[:-1]
    eps = jnp.float32(1e-5)

    # Padded rows exist only on the multi-tile path (batch % tb != 0); they
    # must not pollute BatchNorm statistics.
    need_mask = (batch % tb) != 0
    if need_mask:
        tile_start = pl.program_id(0) * tb
        row_ids = jax.lax.broadcasted_iota(jnp.int32, (tb, 1), 0) + tile_start
        row_mask = row_ids < batch
        n_valid = jnp.minimum(batch - tile_start, tb).astype(jnp.float32)
        inv_n = 1.0 / n_valid
    else:
        row_mask = None
        inv_n = jnp.float32(1.0 / tb)

    def relu_bn(v):
        v = jnp.maximum(v, 0.0)                      # ReLU
        if need_mask:
            v = jnp.where(row_mask, v, 0.0)          # zero padded rows
        # Single-pass BatchNorm1d (training-mode batch stats, gamma=1/beta=0):
        # fused sum + sum-of-squares, biased variance (1/N) like PyTorch.
        s1 = jnp.sum(v, axis=0, keepdims=True)
        s2 = jnp.sum(v * v, axis=0, keepdims=True)
        mean = s1 * inv_n
        var = jnp.maximum(s2 * inv_n - mean * mean, 0.0)
        return (v - mean) * jax.lax.rsqrt(var + eps)

    # Layer 0: one K=2F matmul (user/item concat fused with the gather outside
    # the kernel; W0 passed unsplit).  bf16 operands, f32 accumulation.
    v = (jnp.dot(x_ref[...], params[0][...], preferred_element_type=jnp.float32)
         + params[1][...])
    v = relu_bn(v)
    # TODO(synk): nn.Dropout(p=0.5) is stochastic in training mode in the
    # reference module; treated as identity (eval mode) for determinism.

    # Remaining fc layers (f32 activations / weights).
    for k in range(1, n_fc):
        w = params[2 * k][...]
        b = params[2 * k + 1][...]
        v = jnp.dot(v, w, preferred_element_type=jnp.float32) + b
        v = relu_bn(v)

    # Logits head emitted transposed: (1, D) x (tb, D)^T -> (1, tb), so the
    # output store is lane-dense (full-width vst, not a 1/128 masked store).
    # TODO(synk): if MLIR shows the (tb, D) operand transpose landing on the
    # critical path (not hidden under MXU pushes), fall back to v @ w_l.
    w_lt = params[-2][...]          # (1, D_last)
    b_l = params[-1][...]           # (1, 1)
    logits = jax.lax.dot_general(
        w_lt, v, dimension_numbers=(((1,), (1,)), ((), ())),
        preferred_element_type=jnp.float32) + b_l
    # Sigmoid: reciprocal on the EUP (approx) + clamp to keep result in [0, 1].
    p = pl.reciprocal(1.0 + jnp.exp(-logits), approx=True)
    out_ref[...] = jnp.minimum(p, 1.0)


def mlp_pallas(x, fc_params, logits_params, *, max_tile=2048):
    """x: [B, 2F] user||item embeddings (bf16 or f32);
    fc_params: list of (W[in,out] f32, b[1,out] f32);
    logits_params: (W[d,1] f32, b[1,1] f32).  Returns sigmoid ratings [B, 1] f32."""
    B, K0 = x.shape
    n_fc = len(fc_params)

    if B <= max_tile:
        # Single tile covering the whole batch: every block equals the full
        # array (the (8,128) divisibility rule is exempt), no padding, no row
        # masking, and BatchNorm statistics are exact whole-batch stats.
        tb = B
        b_pad = B
    else:
        # Large batch: lane-aligned tiles, >=2 grid steps (shards across both
        # v7x TensorCores via "parallel"; v5e/v6e just loop).
        # TODO(synk): BatchNorm batch statistics become per-tile on this path,
        # diverging from single-big-batch PyTorch semantics.
        tb = min(max_tile, _round_up((B + 1) // 2, 128))
        b_pad = _round_up(B, tb)
        x = jnp.pad(x, ((0, b_pad - B), (0, 0)))

    w0, b0 = fc_params[0]
    flat = [w0.astype(x.dtype), b0]     # layer-0 weight in activation dtype (bf16 MXU path)
    for w, b in fc_params[1:]:
        flat += [w, b]
    w_l, b_l = logits_params
    flat += [w_l.T, b_l]                # (1, D_last), (1, 1)

    grid = (b_pad // tb,)
    x_spec = pl.BlockSpec((tb, K0), lambda i: (i, 0))
    # Constant index_map -> weights/biases DMA'd once and kept VMEM-resident.
    const_specs = [pl.BlockSpec(p.shape, lambda i: (0, 0)) for p in flat]
    out_spec = pl.BlockSpec((1, tb), lambda i: (0, i))

    widths = [w.shape[1] for w, _ in fc_params]
    mm_flops = sum(w.shape[0] * w.shape[1] for w, _ in fc_params) + w_l.shape[0]
    cost = pl.CostEstimate(
        flops=2 * b_pad * mm_flops + 8 * b_pad * sum(widths),
        transcendentals=b_pad + grid[0] * sum(widths),
        bytes_accessed=int(x.dtype.itemsize) * b_pad * K0 + 4 * b_pad
        + 4 * sum(int(p.size) for p in flat),
    )

    out = pl.pallas_call(
        functools.partial(_mlp_kernel, n_fc, tb, B),
        out_shape=jax.ShapeDtypeStruct((1, b_pad), jnp.float32),
        grid_spec=pltpu.PrefetchScalarGridSpec(
            num_scalar_prefetch=0,
            grid=grid,
            in_specs=[x_spec] + const_specs,
            out_specs=out_spec,
        ),
        compiler_params=pltpu.CompilerParams(
            dimension_semantics=("parallel",)),
        cost_estimate=cost,
    )(x, *flat)
    return out[0, :B].reshape(B, 1)


class MLPModel:
    """JAX/Pallas port of Multi_Layer_Perceptron (NCF MLP)."""

    def __init__(self, num_users, num_items, factor_num, layers, key):
        assert layers[0] == 2 * factor_num
        self.layers = layers
        keys = jax.random.split(key, 3 + 2 * len(layers))
        k = iter(keys)
        self.embedding_user = jax.random.uniform(
            next(k), (num_users, factor_num), jnp.float32, -0.1, 0.1)
        self.embedding_item = jax.random.uniform(
            next(k), (num_items, factor_num), jnp.float32, -0.1, 0.1)
        self.fc_params = []
        for in_size, out_size in zip(layers[:-1], layers[1:]):
            w = jax.random.uniform(next(k), (in_size, out_size), jnp.float32, -0.1, 0.1)
            b = jax.random.uniform(next(k), (1, out_size), jnp.float32, -0.1, 0.1)
            self.fc_params.append((w, b))
        wl = jax.random.uniform(next(k), (layers[-1], 1), jnp.float32, -0.1, 0.1)
        bl = jax.random.uniform(next(k), (1, 1), jnp.float32, -0.1, 0.1)
        self.logits_params = (wl, bl)

    def __call__(self, user_indices, item_indices):
        # TODO(synk): embedding gather left as XLA glue (jnp.take); XLA fuses
        # gather + concat + bf16 cast into one pass writing the (B, 2F) slab,
        # which feeds the kernel's single layer-0 matmul directly.
        u = jnp.take(self.embedding_user, user_indices, axis=0)
        i = jnp.take(self.embedding_item, item_indices, axis=0)
        # Matmul operands in bf16 (halves input HBM/VMEM traffic, native MXU
        # dtype on v5e/v6e/v7x); accumulation / BN / ReLU stay f32 in-kernel.
        x = jnp.concatenate([u, i], axis=-1).astype(jnp.bfloat16)
        return mlp_pallas(x, self.fc_params, self.logits_params)


if __name__ == "__main__":
    key = jax.random.PRNGKey(0)
    k_model, k_u, k_i = jax.random.split(key, 3)

    num_users, num_items = 10, 12
    factor_num = 8
    layers = [16, 32, 16, 8]   # layers[0] == 2 * factor_num
    batch = 8

    model = MLPModel(num_users, num_items, factor_num, layers, k_model)

    user_indices = jax.random.randint(k_u, (batch,), 0, num_users)
    item_indices = jax.random.randint(k_i, (batch,), 0, num_items)

    rating = model(user_indices, item_indices)
    rating = jax.block_until_ready(rating)
    assert rating.shape == (batch, 1)
    assert bool(jnp.all(jnp.isfinite(rating)))
    assert bool(jnp.all((rating >= 0.0) & (rating <= 1.0)))
    print("KERNEL_OK")
</pallas_src>

<mosaic_0001>
module attributes {stable_mosaic.version = 11 : i64} {
  func.func @_mlp_kernel(%arg0: i32, %arg1: memref<8x16xbf16, #tpu.memory_space<vmem>>, %arg2: memref<16x32xbf16, #tpu.memory_space<vmem>>, %arg3: memref<1x32xf32, #tpu.memory_space<vmem>>, %arg4: memref<32x16xf32, #tpu.memory_space<vmem>>, %arg5: memref<1x16xf32, #tpu.memory_space<vmem>>, %arg6: memref<16x8xf32, #tpu.memory_space<vmem>>, %arg7: memref<1x8xf32, #tpu.memory_space<vmem>>, %arg8: memref<1x8xf32, #tpu.memory_space<vmem>>, %arg9: memref<1x1xf32, #tpu.memory_space<vmem>>, %arg10: memref<1x8xf32, #tpu.memory_space<vmem>>) attributes {dimension_semantics = [#tpu.dimension_semantics<parallel>], iteration_bounds = array<i64: 1>, scalar_prefetch = 0 : i64, scratch_operands = 0 : i64, tpu.core_type = #tpu.core_type<tc>, window_params = [{transform_indices = @transform_0, window_bounds = array<i64: 8, 16>}, {pipeline_mode = #tpu.pipeline_mode<synchronous>, transform_indices = @transform_1, window_bounds = array<i64: 16, 32>}, {pipeline_mode = #tpu.pipeline_mode<synchronous>, transform_indices = @transform_2, window_bounds = array<i64: 1, 32>}, {pipeline_mode = #tpu.pipeline_mode<synchronous>, transform_indices = @transform_3, window_bounds = array<i64: 32, 16>}, {pipeline_mode = #tpu.pipeline_mode<synchronous>, transform_indices = @transform_4, window_bounds = array<i64: 1, 16>}, {pipeline_mode = #tpu.pipeline_mode<synchronous>, transform_indices = @transform_5, window_bounds = array<i64: 16, 8>}, {pipeline_mode = #tpu.pipeline_mode<synchronous>, transform_indices = @transform_6, window_bounds = array<i64: 1, 8>}, {pipeline_mode = #tpu.pipeline_mode<synchronous>, transform_indices = @transform_7, window_bounds = array<i64: 1, 8>}, {pipeline_mode = #tpu.pipeline_mode<synchronous>, transform_indices = @transform_8, window_bounds = array<i64: 1, 1>}, {transform_indices = @transform_9, window_bounds = array<i64: 1, 8>}]} {
    %c0 = arith.constant 0 : index
    %c0_0 = arith.constant 0 : index
    %0 = vector.load %arg1[%c0, %c0_0] : memref<8x16xbf16, #tpu.memory_space<vmem>>, vector<8x16xbf16>
    %c0_1 = arith.constant 0 : index
    %c0_2 = arith.constant 0 : index
    %1 = vector.load %arg2[%c0_1, %c0_2] : memref<16x32xbf16, #tpu.memory_space<vmem>>, vector<16x32xbf16>
    %cst = arith.constant dense<0.000000e+00> : vector<8x32xf32>
    %2 = tpu.matmul %0, %1, %cst {dimension_numbers = #tpu.dot_dimension_numbers<[1], [0], [0], [1], [0, 0, 1, 1], [], []>} : vector<8x16xbf16>, vector<16x32xbf16>, vector<8x32xf32> -> vector<8x32xf32>
    %c0_3 = arith.constant 0 : index
    %c0_4 = arith.constant 0 : index
    %3 = vector.load %arg3[%c0_3, %c0_4] : memref<1x32xf32, #tpu.memory_space<vmem>>, vector<1x32xf32>
    %4 = vector.broadcast %3 : vector<1x32xf32> to vector<8x32xf32>
    %5 = arith.addf %2, %4 : vector<8x32xf32>
    %cst_5 = arith.constant 0.000000e+00 : f32
    %6 = vector.broadcast %cst_5 : f32 to vector<8x32xf32>
    %7 = arith.maximumf %5, %6 : vector<8x32xf32>
    %cst_6 = arith.constant dense<0.000000e+00> : vector<32xf32>
    %8 = vector.multi_reduction <add>, %7, %cst_6 [0] : vector<8x32xf32> to vector<32xf32>
    %9 = vector.shape_cast %8 : vector<32xf32> to vector<1x32xf32>
    %10 = arith.mulf %7, %7 : vector<8x32xf32>
    %cst_7 = arith.constant dense<0.000000e+00> : vector<32xf32>
    %11 = vector.multi_reduction <add>, %10, %cst_7 [0] : vector<8x32xf32> to vector<32xf32>
    %12 = vector.shape_cast %11 : vector<32xf32> to vector<1x32xf32>
    %cst_8 = arith.constant 1.250000e-01 : f32
    %13 = vector.broadcast %cst_8 : f32 to vector<1x32xf32>
    %14 = arith.mulf %9, %13 : vector<1x32xf32>
    %cst_9 = arith.constant 1.250000e-01 : f32
    %15 = vector.broadcast %cst_9 : f32 to vector<1x32xf32>
    %16 = arith.mulf %12, %15 : vector<1x32xf32>
    %17 = arith.mulf %14, %14 : vector<1x32xf32>
    %18 = arith.subf %16, %17 : vector<1x32xf32>
    %cst_10 = arith.constant 0.000000e+00 : f32
    %19 = vector.broadcast %cst_10 : f32 to vector<1x32xf32>
    %20 = arith.maximumf %18, %19 : vector<1x32xf32>
    %21 = vector.broadcast %14 : vector<1x32xf32> to vector<8x32xf32>
    %22 = arith.subf %7, %21 : vector<8x32xf32>
    %cst_11 = arith.constant 9.99999974E-6 : f32
    %23 = vector.broadcast %cst_11 : f32 to vector<1x32xf32>
    %24 = arith.addf %20, %23 : vector<1x32xf32>
    %25 = math.rsqrt %24 : vector<1x32xf32>
    %26 = vector.broadcast %25 : vector<1x32xf32> to vector<8x32xf32>
    %27 = arith.mulf %22, %26 : vector<8x32xf32>
    %c0_12 = arith.constant 0 : index
    %c0_13 = arith.constant 0 : index
    %28 = vector.load %arg4[%c0_12, %c0_13] : memref<32x16xf32, #tpu.memory_space<vmem>>, vector<32x16xf32>
    %c0_14 = arith.constant 0 : index
    %c0_15 = arith.constant 0 : index
    %29 = vector.load %arg5[%c0_14, %c0_15] : memref<1x16xf32, #tpu.memory_space<vmem>>, vector<1x16xf32>
    %cst_16 = arith.constant dense<0.000000e+00> : vector<8x16xf32>
    %30 = tpu.matmul %27, %28, %cst_16 {dimension_numbers = #tpu.dot_dimension_numbers<[1], [0], [0], [1], [0, 0, 1, 1], [], []>} : vector<8x32xf32>, vector<32x16xf32>, vector<8x16xf32> -> vector<8x16xf32>
    %31 = vector.broadcast %29 : vector<1x16xf32> to vector<8x16xf32>
    %32 = arith.addf %30, %31 : vector<8x16xf32>
    %cst_17 = arith.constant 0.000000e+00 : f32
    %33 = vector.broadcast %cst_17 : f32 to vector<8x16xf32>
    %34 = arith.maximumf %32, %33 : vector<8x16xf32>
    %cst_18 = arith.constant dense<0.000000e+00> : vector<16xf32>
    %35 = vector.multi_reduction <add>, %34, %cst_18 [0] : vector<8x16xf32> to vector<16xf32>
    %36 = vector.shape_cast %35 : vector<16xf32> to vector<1x16xf32>
    %37 = arith.mulf %34, %34 : vector<8x16xf32>
    %cst_19 = arith.constant dense<0.000000e+00> : vector<16xf32>
    %38 = vector.multi_reduction <add>, %37, %cst_19 [0] : vector<8x16xf32> to vector<16xf32>
    %39 = vector.shape_cast %38 : vector<16xf32> to vector<1x16xf32>
    %cst_20 = arith.constant 1.250000e-01 : f32
    %40 = vector.broadcast %cst_20 : f32 to vector<1x16xf32>
    %41 = arith.mulf %36, %40 : vector<1x16xf32>
    %cst_21 = arith.constant 1.250000e-01 : f32
    %42 = vector.broadcast %cst_21 : f32 to vector<1x16xf32>
    %43 = arith.mulf %39, %42 : vector<1x16xf32>
    %44 = arith.mulf %41, %41 : vector<1x16xf32>
    %45 = arith.subf %43, %44 : vector<1x16xf32>
    %cst_22 = arith.constant 0.000000e+00 : f32
    %46 = vector.broadcast %cst_22 : f32 to vector<1x16xf32>
    %47 = arith.maximumf %45, %46 : vector<1x16xf32>
    %48 = vector.broadcast %41 : vector<1x16xf32> to vector<8x16xf32>
    %49 = arith.subf %34, %48 : vector<8x16xf32>
    %cst_23 = arith.constant 9.99999974E-6 : f32
    %50 = vector.broadcast %cst_23 : f32 to vector<1x16xf32>
    %51 = arith.addf %47, %50 : vector<1x16xf32>
    %52 = math.rsqrt %51 : vector<1x16xf32>
    %53 = vector.broadcast %52 : vector<1x16xf32> to vector<8x16xf32>
    %54 = arith.mulf %49, %53 : vector<8x16xf32>
    %c0_24 = arith.constant 0 : index
    %c0_25 = arith.constant 0 : index
    %55 = vector.load %arg6[%c0_24, %c0_25] : memref<16x8xf32, #tpu.memory_space<vmem>>, vector<16x8xf32>
    %c0_26 = arith.constant 0 : index
    %c0_27 = arith.constant 0 : index
    %56 = vector.load %arg7[%c0_26, %c0_27] : memref<1x8xf32, #tpu.memory_space<vmem>>, vector<1x8xf32>
    %cst_28 = arith.constant dense<0.000000e+00> : vector<8x8xf32>
    %57 = tpu.matmul %54, %55, %cst_28 {dimension_numbers = #tpu.dot_dimension_numbers<[1], [0], [0], [1], [0, 0, 1, 1], [], []>} : vector<8x16xf32>, vector<16x8xf32>, vector<8x8xf32> -> vector<8x8xf32>
    %58 = vector.broadcast %56 : vector<1x8xf32> to vector<8x8xf32>
    %59 = arith.addf %57, %58 : vector<8x8xf32>
    %cst_29 = arith.constant 0.000000e+00 : f32
    %60 = vector.broadcast %cst_29 : f32 to vector<8x8xf32>
    %61 = arith.maximumf %59, %60 : vector<8x8xf32>
    %cst_30 = arith.constant dense<0.000000e+00> : vector<8xf32>
    %62 = vector.multi_reduction <add>, %61, %cst_30 [0] : vector<8x8xf32> to vector<8xf32>
    %63 = vector.shape_cast %62 : vector<8xf32> to vector<1x8xf32>
    %64 = arith.mulf %61, %61 : vector<8x8xf32>
    %cst_31 = arith.constant dense<0.000000e+00> : vector<8xf32>
    %65 = vector.multi_reduction <add>, %64, %cst_31 [0] : vector<8x8xf32> to vector<8xf32>
    %66 = vector.shape_cast %65 : vector<8xf32> to vector<1x8xf32>
    %cst_32 = arith.constant 1.250000e-01 : f32
    %67 = vector.broadcast %cst_32 : f32 to vector<1x8xf32>
    %68 = arith.mulf %63, %67 : vector<1x8xf32>
    %cst_33 = arith.constant 1.250000e-01 : f32
    %69 = vector.broadcast %cst_33 : f32 to vector<1x8xf32>
    %70 = arith.mulf %66, %69 : vector<1x8xf32>
    %71 = arith.mulf %68, %68 : vector<1x8xf32>
    %72 = arith.subf %70, %71 : vector<1x8xf32>
    %cst_34 = arith.constant 0.000000e+00 : f32
    %73 = vector.broadcast %cst_34 : f32 to vector<1x8xf32>
    %74 = arith.maximumf %72, %73 : vector<1x8xf32>
    %75 = vector.broadcast %68 : vector<1x8xf32> to vector<8x8xf32>
    %76 = arith.subf %61, %75 : vector<8x8xf32>
    %cst_35 = arith.constant 9.99999974E-6 : f32
    %77 = vector.broadcast %cst_35 : f32 to vector<1x8xf32>
    %78 = arith.addf %74, %77 : vector<1x8xf32>
    %79 = math.rsqrt %78 : vector<1x8xf32>
    %80 = vector.broadcast %79 : vector<1x8xf32> to vector<8x8xf32>
    %81 = arith.mulf %76, %80 : vector<8x8xf32>
    %c0_36 = arith.constant 0 : index
    %c0_37 = arith.constant 0 : index
    %82 = vector.load %arg8[%c0_36, %c0_37] : memref<1x8xf32, #tpu.memory_space<vmem>>, vector<1x8xf32>
    %c0_38 = arith.constant 0 : index
    %c0_39 = arith.constant 0 : index
    %83 = vector.load %arg9[%c0_38, %c0_39] : memref<1x1xf32, #tpu.memory_space<vmem>>, vector<1x1xf32>
    %cst_40 = arith.constant dense<0.000000e+00> : vector<1x8xf32>
    %84 = tpu.matmul %82, %81, %cst_40 {dimension_numbers = #tpu.dot_dimension_numbers<[1], [1], [0], [0], [0, 0, 1, 0], [], []>} : vector<1x8xf32>, vector<8x8xf32>, vector<1x8xf32> -> vector<1x8xf32>
    %85 = vector.broadcast %83 : vector<1x1xf32> to vector<1x8xf32>
    %86 = arith.addf %84, %85 : vector<1x8xf32>
    %cst_41 = arith.constant 0.000000e+00 : f32
    %87 = vector.broadcast %cst_41 : f32 to vector<1x8xf32>
    %88 = arith.subf %87, %86 : vector<1x8xf32>
    %89 = math.exp %88 : vector<1x8xf32>
    %cst_42 = arith.constant 1.000000e+00 : f32
    %90 = vector.broadcast %cst_42 : f32 to vector<1x8xf32>
    %91 = arith.addf %90, %89 : vector<1x8xf32>
    %92 = tpu.reciprocal %91 {approx = true} : vector<1x8xf32> -> vector<1x8xf32>
    %cst_43 = arith.constant 1.000000e+00 : f32
    %93 = vector.broadcast %cst_43 : f32 to vector<1x8xf32>
    %94 = arith.minimumf %92, %93 : vector<1x8xf32>
    %c0_44 = arith.constant 0 : index
    %c0_45 = arith.constant 0 : index
    %95 = vector.load %arg10[%c0_44, %c0_45] : memref<1x8xf32, #tpu.memory_space<vmem>>, vector<1x8xf32>
    tpu.vector_store %arg10[%c0_44, %c0_45], %94 {strides = array<i32>} : memref<1x8xf32, #tpu.memory_space<vmem>>, vector<1x8xf32>,
    return
  }
  func.func @transform_0(%arg0: i32) -> (i32, i32) {
    %c0_i32 = arith.constant 0 : i32
    %c0_i32_0 = arith.constant 0 : i32
    return %arg0, %c0_i32 : i32, i32
  }
  func.func @transform_1(%arg0: i32) -> (i32, i32) {
    %c0_i32 = arith.constant 0 : i32
    %c0_i32_0 = arith.constant 0 : i32
    %c0_i32_1 = arith.constant 0 : i32
    return %c0_i32, %c0_i32_0 : i32, i32
  }
  func.func @transform_2(%arg0: i32) -> (i32, i32) {
    %c0_i32 = arith.constant 0 : i32
    %c0_i32_0 = arith.constant 0 : i32
    %c0_i32_1 = arith.constant 0 : i32
    return %c0_i32, %c0_i32_0 : i32, i32
  }
  func.func @transform_3(%arg0: i32) -> (i32, i32) {
    %c0_i32 = arith.constant 0 : i32
    %c0_i32_0 = arith.constant 0 : i32
    %c0_i32_1 = arith.constant 0 : i32
    return %c0_i32, %c0_i32_0 : i32, i32
  }
  func.func @transform_4(%arg0: i32) -> (i32, i32) {
    %c0_i32 = arith.constant 0 : i32
    %c0_i32_0 = arith.constant 0 : i32
    %c0_i32_1 = arith.constant 0 : i32
    return %c0_i32, %c0_i32_0 : i32, i32
  }
  func.func @transform_5(%arg0: i32) -> (i32, i32) {
    %c0_i32 = arith.constant 0 : i32
    %c0_i32_0 = arith.constant 0 : i32
    %c0_i32_1 = arith.constant 0 : i32
    return %c0_i32, %c0_i32_0 : i32, i32
  }
  func.func @transform_6(%arg0: i32) -> (i32, i32) {
    %c0_i32 = arith.constant 0 : i32
    %c0_i32_0 = arith.constant 0 : i32
    %c0_i32_1 = arith.constant 0 : i32
    return %c0_i32, %c0_i32_0 : i32, i32
  }
  func.func @transform_7(%arg0: i32) -> (i32, i32) {
    %c0_i32 = arith.constant 0 : i32
    %c0_i32_0 = arith.constant 0 : i32
    %c0_i32_1 = arith.constant 0 : i32
    return %c0_i32, %c0_i32_0 : i32, i32
  }
  func.func @transform_8(%arg0: i32) -> (i32, i32) {
    %c0_i32 = arith.constant 0 : i32
    %c0_i32_0 = arith.constant 0 : i32
    %c0_i32_1 = arith.constant 0 : i32
    return %c0_i32, %c0_i32_0 : i32, i32
  }
  func.func @transform_9(%arg0: i32) -> (i32, i32) {
    %c0_i32 = arith.constant 0 : i32
    %c0_i32_0 = arith.constant 0 : i32
    return %c0_i32, %arg0 : i32, i32
  }
}

</mosaic_0001>

<llo_original>
// kernel: tpu_custom_call.1
$region0: #{tpu_custom_call.1}
  #allocation0 [shape = 'u32[]', space=smem, size = 0x4, offset = 0x4, fixed_abs, tag = 'smem constant byte address 0x4 - core index']
  #allocation1 [shape = 'u32[144,128]{1,0:T(1,128)}', space=vmem, size = 0x12000, scoped, tag = 'internal scratch']
  #allocation2 [shape = 'f32[1,1]{1,0:T(1,128)S(1)}', space=vmem, size = 0x200, scoped, tag = 'scoped memory for tpu_custom_call.1']
  %s0 = inlined_call_operand.vmem [shape: bf16[8,16], index: 0, kind: input, shape index: {}]
  %s1 = inlined_call_operand.vmem [shape: bf16[16,32], index: 1, kind: input, shape index: {}]
  %s2 = inlined_call_operand.vmem [shape: f32[1,32], index: 2, kind: input, shape index: {}]
  %s3 = inlined_call_operand.vmem [shape: f32[32,16], index: 3, kind: input, shape index: {}]
  %s4 = inlined_call_operand.vmem [shape: f32[1,16], index: 4, kind: input, shape index: {}]
  %s5 = inlined_call_operand.vmem [shape: f32[16,8], index: 5, kind: input, shape index: {}]
  %s6 = inlined_call_operand.vmem [shape: f32[1,8], index: 6, kind: input, shape index: {}]
  %s7 = inlined_call_operand.vmem [shape: f32[1,8], index: 7, kind: input, shape index: {}]
  %s8 = inlined_call_operand.<no memory space> [shape: f32[1,1], index: 8, kind: input, shape index: {}]
  %s9 = inlined_call_operand.hbm [shape: f32[1,8], index: 9, kind: output, shape index: {}]
  %s10 = sld [smem:[#allocation0]]
  $region46: #{tpu_custom_call.1} parent=0
    _
  %s12 = ssub.s32 1, %s10
  %s13 = scalar_select 0, %s12, %s10
  %v14 = vstv %s8
  %15 = vst [vmem:[#allocation2] sm:$0x1] %v14
  $region1: #{tpu_custom_call.1} parent=0
    #allocation3 [shape = 'u8[512]{0}', space=vmem, size = 0x400, scoped, tag = 'output window, operand 0, single buffered']
    #allocation4 [shape = 's32[1]{0}', space=sflag, size = 0x4, scoped, tag = 'scoped memory for tpu_custom_call.1']
    %16 = vsyncpa [#allocation4], 0
    // Predicated region
    $region2: #{tpu_custom_call.1} parent=1 // pred_check
      _
    $region3: #{tpu_custom_call.1} parent=1 // pred_check_branch
      %18 = sbr.rel (0) target = $region5
    $region4: #{tpu_custom_call.1} parent=1 // pred_region
      _
    $region5: #{tpu_custom_call.1} parent=1 // pred_fallthru
      _
    // Predicated region
    $region6: #{tpu_custom_call.1} parent=1 // pred_check
      _
    $region7: #{tpu_custom_call.1} parent=1 // pred_check_branch
      %20 = sbr.rel (0) target = $region9
    $region8: #{tpu_custom_call.1} parent=1 // pred_region
      _
    $region9: #{tpu_custom_call.1} parent=1 // pred_fallthru
      _
    // Predicated region
    $region10: #{tpu_custom_call.1} parent=1 // pred_check
      _
    $region11: #{tpu_custom_call.1} parent=1 // pred_check_branch
      %22 = sbr.rel (0) target = $region13
    $region12: #{tpu_custom_call.1} parent=1 // pred_region
      _
    $region13: #{tpu_custom_call.1} parent=1 // pred_fallthru
      _
    // Predicated region
    $region14: #{tpu_custom_call.1} parent=1 // pred_check
      _
    $region15: #{tpu_custom_call.1} parent=1 // pred_check_branch
      %24 = sbr.rel (0) target = $region17
    $region16: #{tpu_custom_call.1} parent=1 // pred_region
      _
    $region17: #{tpu_custom_call.1} parent=1 // pred_fallthru
      _
    // Predicated region
    $region18: #{tpu_custom_call.1} parent=1 // pred_check
      _
    $region19: #{tpu_custom_call.1} parent=1 // pred_check_branch
      %26 = sbr.rel (0) target = $region21
    $region20: #{tpu_custom_call.1} parent=1 // pred_region
      _
    $region21: #{tpu_custom_call.1} parent=1 // pred_fallthru
      _
    // Predicated region
    $region22: #{tpu_custom_call.1} parent=1 // pred_check
      _
    $region23: #{tpu_custom_call.1} parent=1 // pred_check_branch
      %28 = sbr.rel (0) target = $region25
    $region24: #{tpu_custom_call.1} parent=1 // pred_region
      _
    $region25: #{tpu_custom_call.1} parent=1 // pred_fallthru
      _
    // Predicated region
    $region26: #{tpu_custom_call.1} parent=1 // pred_check
      _
    $region27: #{tpu_custom_call.1} parent=1 // pred_check_branch
      %30 = sbr.rel (0) target = $region29
    $region28: #{tpu_custom_call.1} parent=1 // pred_region
      _
    $region29: #{tpu_custom_call.1} parent=1 // pred_fallthru
      _
    // Predicated region
    $region30: #{tpu_custom_call.1} parent=1 // pred_check
      _
    $region31: #{tpu_custom_call.1} parent=1 // pred_check_branch
      %32 = sbr.rel (0) target = $region33
    $region32: #{tpu_custom_call.1} parent=1 // pred_region
      _
    $region33: #{tpu_custom_call.1} parent=1 // pred_fallthru
      _
    // Predicated region
    $region34: #{tpu_custom_call.1} parent=1 // pred_check
      _
    $region35: #{tpu_custom_call.1} parent=1 // pred_check_branch
      %34 = sbr.rel (0) target = $region37
    $region36: #{tpu_custom_call.1} parent=1 // pred_region
      _
    $region37: #{tpu_custom_call.1} parent=1 // pred_fallthru
      _
    %v36 = vld [vmem:[%s0] sm:$0xf]
    %v37 = vld [vmem:[%s1] sm:$0xf]
    %v38 = vld [vmem:[%s1 + $0x4] sm:$0xf]
    %v39 = vld [vmem:[%s2] sm:$0x1]
    %v41 = vlaneseq
    %v42 = vshrl.u32 %v41, 7
    %v43 = vsub.s32 0, %v42
    %v44 = vrot.slane %v39, %v43
    %v48 = vunpack.c.l.b16 %v37
    %v49 = vunpack.c.l.b16 %v38
    %v50 = vpack.c.b16 %v49, %v48
    %vm52 = vcmask 130048
    %v54 = vsel %vm52, %v36, 0
    %56 = vmatprep.subr.bf16.mxu0 0
    %57 = vmatpush1.bf16.msra.mxu0 %v50
    %58 = vmatprep.subr.bf16.mxu0 0
    %59 = vmatpush1.bf16.msra.mxu0 0
    %60 = vmatprep.subr.bf16.mxu0 0
    %61 = vmatpush1.bf16.msra.mxu0 0
    %62 = vmatprep.subr.bf16.mxu0 0
    %63 = vmatpush1.bf16.msra.mxu0 0
    %64 = vmatprep.subr.bf16.mxu0 0
    %65 = vmatpush1.bf16.msra.mxu0 0
    %66 = vmatprep.subr.bf16.mxu0 0
    %67 = vmatpush1.bf16.msra.mxu0 0
    %68 = vmatprep.subr.bf16.mxu0 0
    %69 = vmatpush1.bf16.msra.mxu0 0
    %70 = vmatprep.subr.bf16.mxu0 0
    %71 = vmatpush1.bf16.msra.mxu0 0
    %72 = vmatprep.subr.bf16.mxu0 0
    %73 = vmatpush1.bf16.msra.mxu0 0
    %74 = vmatprep.subr.bf16.mxu0 0
    %75 = vmatpush1.bf16.msra.mxu0 0
    %76 = vmatprep.subr.bf16.mxu0 0
    %77 = vmatpush1.bf16.msra.mxu0 0
    %78 = vmatprep.subr.bf16.mxu0 0
    %79 = vmatpush1.bf16.msra.mxu0 0
    %80 = vmatprep.subr.bf16.mxu0 0
    %81 = vmatpush1.bf16.msra.mxu0 0
    %82 = vmatprep.subr.bf16.mxu0 0
    %83 = vmatpush1.bf16.msra.mxu0 0
    %84 = vmatprep.subr.bf16.mxu0 0
    %85 = vmatpush1.bf16.msra.mxu0 0
    %86 = vmatprep.subr.bf16.mxu0 0
    %87 = vmatpush1.bf16.msra.mxu0 0
    %88 = vmatprep.mubr.bf16.mxu0 0
    %89 = vmatmul.mubr.bf16.gmra.mrb[0].mxu0 %v54
    %v90 = vpop.f32.mrb[0].mxu0
    %v91 = vadd.f32 %v44, %v90
    %v92 = vpop.f32.mrb[0].mxu0
    %v93 = vpop.f32.mrb[0].mxu0
    %v94 = vpop.f32.mrb[0].mxu0
    %95 = vdwg.mxu0
    %v96 = vmax.f32 %v91, 0.0
    %vm97 = vcmask 261120
    %v98 = vsel %vm97, %v96, 0.0
    %v99 = vrot.slane %v98, 4
    %v100 = vadd.f32 %v98, %v99
    %v101 = vrot.slane %v100, 2
    %v102 = vadd.f32 %v100, %v101
    %v103 = vrot.slane %v102, 1
    %v104 = vadd.f32 %v102, %v103
    %v105 = vmul.f32 %v96, %v96
    %v106 = vsel %vm97, %v105, 0.0
    %v107 = vrot.slane %v106, 4
    %v108 = vadd.f32 %v106, %v107
    %v109 = vrot.slane %v108, 2
    %v110 = vadd.f32 %v108, %v109
    %v111 = vrot.slane %v110, 1
    %v112 = vadd.f32 %v110, %v111
    %v113 = vmul.f32 %v104, 0.125
    %v114 = vmul.f32 %v112, 0.125
    %v115 = vmul.f32 %v113, %v113
    %v116 = vsub.f32 %v114, %v115
    %v117 = vmax.f32 %v116, 0.0
    %v118 = vsub.f32 %v96, %v113
    %v119 = vadd.f32 %v117, 1e-05
    %v120 = vrsqrt.pop %v119
    %v121 = vmul.f32 %v118, %v120
    %v122 = vld [vmem:[%s3] sm:$0xff]
    %v123 = vld [vmem:[%s3 + $0x8] sm:$0xff]
    %v124 = vld [vmem:[%s3 + $0x10] sm:$0xff]
    %v125 = vld [vmem:[%s3 + $0x18] sm:$0xff]
    %v126 = vld [vmem:[%s4] sm:$0x1]
    %v128 = vlaneseq
    %v129 = vshrl.u32 %v128, 7
    %v130 = vsub.s32 0, %v129
    %v131 = vrot.slane %v126, %v130
    %v134 = vsel %vm97, %v121, 0
    %136 = vmatprep.subr.mxu0 0.0
    %137 = vmatpush1.msra.mxu0 %v122
    %138 = vmatprep.subr.mxu0 0.0
    %139 = vmatpush1.msra.mxu0 %v123
    %140 = vmatprep.subr.mxu0 0.0
    %141 = vmatpush1.msra.mxu0 %v124
    %142 = vmatprep.subr.mxu0 0.0
    %143 = vmatpush1.msra.mxu0 %v125
    %144 = vmatprep.subr.mxu0 0.0
    %145 = vmatpush1.msra.mxu0 0.0
    %146 = vmatprep.subr.mxu0 0.0
    %147 = vmatpush1.msra.mxu0 0.0
    %148 = vmatprep.subr.mxu0 0.0
    %149 = vmatpush1.msra.mxu0 0.0
    %150 = vmatprep.subr.mxu0 0.0
    %151 = vmatpush1.msra.mxu0 0.0
    %152 = vmatprep.subr.mxu0 0.0
    %153 = vmatpush1.msra.mxu0 0.0
    %154 = vmatprep.subr.mxu0 0.0
    %155 = vmatpush1.msra.mxu0 0.0
    %156 = vmatprep.subr.mxu0 0.0
    %157 = vmatpush1.msra.mxu0 0.0
    %158 = vmatprep.subr.mxu0 0.0
    %159 = vmatpush1.msra.mxu0 0.0
    %160 = vmatprep.subr.mxu0 0.0
    %161 = vmatpush1.msra.mxu0 0.0
    %162 = vmatprep.subr.mxu0 0.0
    %163 = vmatpush1.msra.mxu0 0.0
    %164 = vmatprep.subr.mxu0 0.0
    %165 = vmatpush1.msra.mxu0 0.0
    %166 = vmatprep.subr.mxu0 0.0
    %167 = vmatpush1.msra.mxu0 0.0
    %168 = vmatprep.subr.mxu0 0.0
    %169 = vmatpush1.msra.mxu0 0.0
    %170 = vmatprep.subr.mxu0 0.0
    %171 = vmatpush1.msra.mxu0 0.0
    %172 = vmatprep.subr.mxu0 0.0
    %173 = vmatpush1.msra.mxu0 0.0
    %174 = vmatprep.subr.mxu0 0.0
    %175 = vmatpush1.msra.mxu0 0.0
    %176 = vmatprep.subr.mxu0 0.0
    %177 = vmatpush1.msra.mxu0 0.0
    %178 = vmatprep.subr.mxu0 0.0
    %179 = vmatpush1.msra.mxu0 0.0
    %180 = vmatprep.subr.mxu0 0.0
    %181 = vmatpush1.msra.mxu0 0.0
    %182 = vmatprep.subr.mxu0 0.0
    %183 = vmatpush1.msra.mxu0 0.0
    %184 = vmatprep.subr.mxu0 0.0
    %185 = vmatpush1.msra.mxu0 0.0
    %186 = vmatprep.subr.mxu0 0.0
    %187 = vmatpush1.msra.mxu0 0.0
    %188 = vmatprep.subr.mxu0 0.0
    %189 = vmatpush1.msra.mxu0 0.0
    %190 = vmatprep.subr.mxu0 0.0
    %191 = vmatpush1.msra.mxu0 0.0
    %192 = vmatprep.subr.mxu0 0.0
    %193 = vmatpush1.msra.mxu0 0.0
    %194 = vmatprep.subr.mxu0 0.0
    %195 = vmatpush1.msra.mxu0 0.0
    %196 = vmatprep.subr.mxu0 0.0
    %197 = vmatpush1.msra.mxu0 0.0
    %198 = vmatprep.subr.mxu0 0.0
    %199 = vmatpush1.msra.mxu0 0.0
    %200 = vmatprep.mubr.f32.mxu0 0.0
    %201 = vmatmul.mubr.f32.gmra.mrb[0].mxu0 %v134
    %v202 = vpop.f32.mrb[0].mxu0
    %v203 = vadd.f32 %v131, %v202
    %v204 = vpop.f32.mrb[0].mxu0
    %205 = vdwg.mxu0
    %v206 = vmax.f32 %v203, 0.0
    %v207 = vsel %vm52, %v206, 0.0
    %v208 = vrot.slane %v207, 4
    %v209 = vadd.f32 %v207, %v208
    %v210 = vrot.slane %v209, 2
    %v211 = vadd.f32 %v209, %v210
    %v212 = vrot.slane %v211, 1
    %v213 = vadd.f32 %v211, %v212
    %v214 = vmul.f32 %v206, %v206
    %v215 = vsel %vm52, %v214, 0.0
    %v216 = vrot.slane %v215, 4
    %v217 = vadd.f32 %v215, %v216
    %v218 = vrot.slane %v217, 2
    %v219 = vadd.f32 %v217, %v218
    %v220 = vrot.slane %v219, 1
    %v221 = vadd.f32 %v219, %v220
    %v222 = vmul.f32 %v213, 0.125
    %v223 = vmul.f32 %v221, 0.125
    %v224 = vmul.f32 %v222, %v222
    %v225 = vsub.f32 %v223, %v224
    %v226 = vmax.f32 %v225, 0.0
    %v227 = vsub.f32 %v206, %v222
    %v228 = vadd.f32 %v226, 1e-05
    %v229 = vrsqrt.pop %v228
    %v230 = vmul.f32 %v227, %v229
    %v231 = vld [vmem:[%s5] sm:$0xff]
    %v232 = vld [vmem:[%s5 + $0x8] sm:$0xff]
    %v233 = vld [vmem:[%s6] sm:$0x1]
    %v235 = vlaneseq
    %v236 = vshrl.u32 %v235, 7
    %v237 = vsub.s32 0, %v236
    %v238 = vrot.slane %v233, %v237
    %v241 = vsel %vm52, %v230, 0
    %243 = vmatprep.subr.mxu0 0.0
    %244 = vmatpush1.msra.mxu0 %v231
    %245 = vmatprep.subr.mxu0 0.0
    %246 = vmatpush1.msra.mxu0 %v232
    %247 = vmatprep.subr.mxu0 0.0
    %248 = vmatpush1.msra.mxu0 0.0
    %249 = vmatprep.subr.mxu0 0.0
    %250 = vmatpush1.msra.mxu0 0.0
    %251 = vmatprep.subr.mxu0 0.0
    %252 = vmatpush1.msra.mxu0 0.0
    %253 = vmatprep.subr.mxu0 0.0
    %254 = vmatpush1.msra.mxu0 0.0
    %255 = vmatprep.subr.mxu0 0.0
    %256 = vmatpush1.msra.mxu0 0.0
    %257 = vmatprep.subr.mxu0 0.0
    %258 = vmatpush1.msra.mxu0 0.0
    %259 = vmatprep.subr.mxu0 0.0
    %260 = vmatpush1.msra.mxu0 0.0
    %261 = vmatprep.subr.mxu0 0.0
    %262 = vmatpush1.msra.mxu0 0.0
    %263 = vmatprep.subr.mxu0 0.0
    %264 = vmatpush1.msra.mxu0 0.0
    %265 = vmatprep.subr.mxu0 0.0
    %266 = vmatpush1.msra.mxu0 0.0
    %267 = vmatprep.subr.mxu0 0.0
    %268 = vmatpush1.msra.mxu0 0.0
    %269 = vmatprep.subr.mxu0 0.0
    %270 = vmatpush1.msra.mxu0 0.0
    %271 = vmatprep.subr.mxu0 0.0
    %272 = vmatpush1.msra.mxu0 0.0
    %273 = vmatprep.subr.mxu0 0.0
    %274 = vmatpush1.msra.mxu0 0.0
    %275 = vmatprep.subr.mxu0 0.0
    %276 = vmatpush1.msra.mxu0 0.0
    %277 = vmatprep.subr.mxu0 0.0
    %278 = vmatpush1.msra.mxu0 0.0
    %279 = vmatprep.subr.mxu0 0.0
    %280 = vmatpush1.msra.mxu0 0.0
    %281 = vmatprep.subr.mxu0 0.0
    %282 = vmatpush1.msra.mxu0 0.0
    %283 = vmatprep.subr.mxu0 0.0
    %284 = vmatpush1.msra.mxu0 0.0
    %285 = vmatprep.subr.mxu0 0.0
    %286 = vmatpush1.msra.mxu0 0.0
    %287 = vmatprep.subr.mxu0 0.0
    %288 = vmatpush1.msra.mxu0 0.0
    %289 = vmatprep.subr.mxu0 0.0
    %290 = vmatpush1.msra.mxu0 0.0
    %291 = vmatprep.subr.mxu0 0.0
    %292 = vmatpush1.msra.mxu0 0.0
    %293 = vmatprep.subr.mxu0 0.0
    %294 = vmatpush1.msra.mxu0 0.0
    %295 = vmatprep.subr.mxu0 0.0
    %296 = vmatpush1.msra.mxu0 0.0
    %297 = vmatprep.subr.mxu0 0.0
    %298 = vmatpush1.msra.mxu0 0.0
    %299 = vmatprep.subr.mxu0 0.0
    %300 = vmatpush1.msra.mxu0 0.0
    %301 = vmatprep.subr.mxu0 0.0
    %302 = vmatpush1.msra.mxu0 0.0
    %303 = vmatprep.subr.mxu0 0.0
    %304 = vmatpush1.msra.mxu0 0.0
    %305 = vmatprep.subr.mxu0 0.0
    %306 = vmatpush1.msra.mxu0 0.0
    %307 = vmatprep.mubr.f32.mxu0 0.0
    %308 = vmatmul.mubr.f32.gmra.mrb[0].mxu0 %v241
    %v309 = vpop.f32.mrb[0].mxu0
    %v310 = vadd.f32 %v238, %v309
    %v311 = vpop.f32.mrb[0].mxu0
    %312 = vdwg.mxu0
    %v313 = vmax.f32 %v310, 0.0
    %vm314 = vcmask 64512
    %v315 = vsel %vm314, %v313, 0.0
    %v316 = vrot.slane %v315, 4
    %v317 = vadd.f32 %v315, %v316
    %v318 = vrot.slane %v317, 2
    %v319 = vadd.f32 %v317, %v318
    %v320 = vrot.slane %v319, 1
    %v321 = vadd.f32 %v319, %v320
    %v322 = vmul.f32 %v313, %v313
    %v323 = vsel %vm314, %v322, 0.0
    %v324 = vrot.slane %v323, 4
    %v325 = vadd.f32 %v323, %v324
    %v326 = vrot.slane %v325, 2
    %v327 = vadd.f32 %v325, %v326
    %v328 = vrot.slane %v327, 1
    %v329 = vadd.f32 %v327, %v328
    %v330 = vmul.f32 %v321, 0.125
    %v331 = vmul.f32 %v329, 0.125
    %v332 = vmul.f32 %v330, %v330
    %v333 = vsub.f32 %v331, %v332
    %v334 = vmax.f32 %v333, 0.0
    %v335 = vsub.f32 %v313, %v330
    %v336 = vadd.f32 %v334, 1e-05
    %v337 = vrsqrt.pop %v336
    %v338 = vmul.f32 %v335, %v337
    %v339 = vld [vmem:[%s7] sm:$0x1]
    %v340 = vld [vmem:[#allocation2] sm:$0x1]
    %342 = vset.pattern.permute.xlu0 0
    %343 = vperm.xlu0 %342, %v340
    %v344 = vpop.permute.xlu0 %343
    %v346 = vlaneseq
    %v347 = vshrl.u32 %v346, 7
    %v348 = vsub.s32 0, %v347
    %v349 = vrot.slane %v344, %v348
    %v351 = vsel %vm314, %v339, 0
    %v354 = vsel %vm314, %v338, 0
    %356 = vmatprep.subr.mxu0 0.0
    %357 = vmatpush1.xpose.msra.mxu0 %v354
    %358 = vmatprep.subr.mxu0 0.0
    %359 = vmatpush1.xpose.msra.mxu0 0.0
    %360 = vmatprep.subr.mxu0 0.0
    %361 = vmatpush1.xpose.msra.mxu0 0.0
    %362 = vmatprep.subr.mxu0 0.0
    %363 = vmatpush1.xpose.msra.mxu0 0.0
    %364 = vmatprep.subr.mxu0 0.0
    %365 = vmatpush1.xpose.msra.mxu0 0.0
    %366 = vmatprep.subr.mxu0 0.0
    %367 = vmatpush1.xpose.msra.mxu0 0.0
    %368 = vmatprep.subr.mxu0 0.0
    %369 = vmatpush1.xpose.msra.mxu0 0.0
    %370 = vmatprep.subr.mxu0 0.0
    %371 = vmatpush1.xpose.msra.mxu0 0.0
    %372 = vmatprep.subr.mxu0 0.0
    %373 = vmatpush1.xpose.msra.mxu0 0.0
    %374 = vmatprep.subr.mxu0 0.0
    %375 = vmatpush1.xpose.msra.mxu0 0.0
    %376 = vmatprep.subr.mxu0 0.0
    %377 = vmatpush1.xpose.msra.mxu0 0.0
    %378 = vmatprep.subr.mxu0 0.0
    %379 = vmatpush1.xpose.msra.mxu0 0.0
    %380 = vmatprep.subr.mxu0 0.0
    %381 = vmatpush1.xpose.msra.mxu0 0.0
    %382 = vmatprep.subr.mxu0 0.0
    %383 = vmatpush1.xpose.msra.mxu0 0.0
    %384 = vmatprep.subr.mxu0 0.0
    %385 = vmatpush1.xpose.msra.mxu0 0.0
    %386 = vmatprep.subr.mxu0 0.0
    %387 = vmatpush1.xpose.msra.mxu0 0.0
    %388 = vmatprep.subr.mxu0 0.0
    %389 = vmatpush1.xpose.msra.mxu0 0.0
    %390 = vmatprep.subr.mxu0 0.0
    %391 = vmatpush1.xpose.msra.mxu0 0.0
    %392 = vmatprep.subr.mxu0 0.0
    %393 = vmatpush1.xpose.msra.mxu0 0.0
    %394 = vmatprep.subr.mxu0 0.0
    %395 = vmatpush1.xpose.msra.mxu0 0.0
    %396 = vmatprep.subr.mxu0 0.0
    %397 = vmatpush1.xpose.msra.mxu0 0.0
    %398 = vmatprep.subr.mxu0 0.0
    %399 = vmatpush1.xpose.msra.mxu0 0.0
    %400 = vmatprep.subr.mxu0 0.0
    %401 = vmatpush1.xpose.msra.mxu0 0.0
    %402 = vmatprep.subr.mxu0 0.0
    %403 = vmatpush1.xpose.msra.mxu0 0.0
    %404 = vmatprep.subr.mxu0 0.0
    %405 = vmatpush1.xpose.msra.mxu0 0.0
    %406 = vmatprep.subr.mxu0 0.0
    %407 = vmatpush1.xpose.msra.mxu0 0.0
    %408 = vmatprep.subr.mxu0 0.0
    %409 = vmatpush1.xpose.msra.mxu0 0.0
    %410 = vmatprep.subr.mxu0 0.0
    %411 = vmatpush1.xpose.msra.mxu0 0.0
    %412 = vmatprep.subr.mxu0 0.0
    %413 = vmatpush1.xpose.msra.mxu0 0.0
    %414 = vmatprep.subr.mxu0 0.0
    %415 = vmatpush1.xpose.msra.mxu0 0.0
    %416 = vmatprep.subr.mxu0 0.0
    %417 = vmatpush1.xpose.msra.mxu0 0.0
    %418 = vmatprep.subr.mxu0 0.0
    %419 = vmatpush1.xpose.msra.mxu0 0.0
    %420 = vmatprep.mubr.f32.mxu0 0.0
    %421 = vmatmul.mubr.f32.gmra.mrb[0].mxu0 %v351
    %v422 = vpop.f32.mrb[0].mxu0
    %v423 = vadd.f32 %v349, %v422
    %v424 = vpop.f32.mrb[0].mxu0
    %425 = vdwg.mxu0
    %v426 = vsub.f32 0.0, %v423
    %v427 = vmul.f32 %v426, 1.442695
    %v428 = vpow.pop %v427
    %v429 = vadd.f32 %v428, 1.0
    %v430 = vrcp.pop %v429
    %v431 = vmin.f32 %v430, 1.0
    %vm432 = vcmask 57344
    %433 = vst.msk [vmem:[#allocation3] sm:$0x1] %vm432, %v431
    // Predicated region
    $region38: #{tpu_custom_call.1} parent=1 // pred_check
      _
    $region39: #{tpu_custom_call.1} parent=1 // pred_check_branch
      %435 = sbr.rel (0) target = $region41
    $region40: #{tpu_custom_call.1} parent=1 // pred_region
      %s437 = ssub.s32 16, 16
      %438 = vsyncadd [#allocation4], %s437
      %s440 = sshll.u32 [#allocation3], 4
      %s441 = int_to_ptr.vmem [resolvable:$true] %s440
      %443 = dma.vmem_to_hbm [thread:$0]  %s441, 16, %s9, [#allocation4]
    $region41: #{tpu_custom_call.1} parent=1 // pred_fallthru
      _
    // Predicated region
    $region42: #{tpu_custom_call.1} parent=1 // pred_check
      _
    $region43: #{tpu_custom_call.1} parent=1 // pred_check_branch
      %445 = sbr.rel (0) target = $region45
    $region44: #{tpu_custom_call.1} parent=1 // pred_region
      %446 = dma.done [#allocation4], 16
    $region45: #{tpu_custom_call.1} parent=1 // pred_fallthru
      _
    %447 = vsyncpa [#allocation4], 1

</llo_original>
